<compile_context>
chip_gen: v5e
topology: v5e:2x2
jax: 0.10.0
libtpu: 0.0.40
codegen_flags: <defaults>
</compile_context>

<pallas_src>
import math

import jax
import jax.numpy as jnp
from jax.experimental import pallas as pl
from jax.experimental.pallas import tpu as pltpu


def make_positional_encoding(embed_dim: int, max_len: int = 100,
                             dtype=jnp.float32) -> jnp.ndarray:
    """Sinusoidal table, identical math to the PyTorch __init__."""
    position = jnp.arange(0, max_len, dtype=jnp.float32)[:, None]          # (max_len, 1)
    div_term = jnp.exp(
        jnp.arange(0, embed_dim, 2, dtype=jnp.float32)
        * (-math.log(10000.0) / embed_dim))                                # (embed_dim//2,)
    angles = position * div_term                                           # (max_len, embed_dim//2)
    pe = jnp.zeros((max_len, embed_dim), dtype=jnp.float32)
    pe = pe.at[:, 0::2].set(jnp.sin(angles))
    pe = pe.at[:, 1::2].set(jnp.cos(angles))
    return pe.astype(dtype)


def _add_pe_kernel(x_ref, pe_ref, o_ref):
    # x_ref/o_ref: (TB, TC) tile of the flattened (batch, seq*embed) array.
    # pe_ref: (1, TC) tile of the flattened pe table, broadcast over rows.
    o_ref[...] = x_ref[...] + pe_ref[...]


def _vmem_capacity_bytes(default: int = 128 << 20) -> int:
    """Physical per-core VMEM (falls back to 128 MiB if unavailable)."""
    try:
        info = pltpu.get_tpu_info()
        cap = getattr(info, "vmem_capacity_bytes", None)
        if cap:
            return int(cap)
    except Exception:
        pass
    return default


def _pick_tile(dim: int, max_tile: int, align: int) -> int:
    """Tile for `dim`: a multiple of `align`, <= max_tile (prefers divisors).

    If dim <= align the full extent is returned (always a legal block shape).
    Non-dividing tiles are fine: the grid uses cdiv and Pallas masks the
    ragged last block, so the result is never a single unbounded block."""
    if dim <= align:
        return dim
    upper = min(dim, max_tile)
    upper = max(align, (upper // align) * align)
    t = upper
    while t >= align:
        if dim % t == 0:
            return t
        t -= align
    return upper


def positional_encoding_forward(x: jnp.ndarray, pe: jnp.ndarray, *,
                                force_pallas: bool = False) -> jnp.ndarray:
    """x: (B, S, E); pe: (max_len, E). Returns x + pe[None, :S, :]."""
    B, S, E = x.shape
    itemsize = jnp.dtype(x.dtype).itemsize

    # NOTE: if x is lower precision than pe (e.g. bf16 x, f32 table) this cast
    # rounds slightly differently from PyTorch's mixed-precision add.
    pe_slice = pe[:S, :].astype(x.dtype)

    # Tiny inputs: a fused XLA add beats any pallas_call launch overhead.
    if not force_pallas and x.size * itemsize < (256 << 10):
        return x + pe_slice[None]

    # Fold (S, E) into one lane-dense column axis; batch stays on the rows.
    C = S * E
    x2 = x.reshape(B, C)
    pe2 = pe_slice.reshape(1, C)

    vmem_cap = _vmem_capacity_bytes()
    target_block = (4 << 20) if vmem_cap <= (64 << 20) else (6 << 20)
    pe_buf_budget = 2 << 20              # per pe buffer, AFTER sublane padding
    hard_cap = (vmem_cap * 3) // 4       # never request more than ~3/4 physical

    # A (1, TC) pe block pads to a full 8-sublane (32-bit) tile in VMEM, so a
    # pe buffer is ~32 * TC bytes regardless of dtype.  Cap TC so that (a) two
    # padded pe buffers stay within budget and (b) an 8-row x block stays
    # within the target block size.
    col_cap = max(128, min(pe_buf_budget // 32, target_block // (8 * itemsize)))
    TC = _pick_tile(C, col_cap, 128)
    row_cap = max(8, target_block // (TC * itemsize))
    TB = _pick_tile(B, row_cap, 8)

    n_c = pl.cdiv(C, TC)
    n_b = pl.cdiv(B, TB)

    # Honest footprint: 2 double-buffered x blocks + 2 out blocks + 2 padded
    # pe buffers.  Always pass a limit, clamped to the chip.
    est_vmem = 4 * TB * TC * itemsize + 2 * 32 * TC
    vmem_limit = int(min(max(est_vmem + (4 << 20), 16 << 20), hard_cap))

    out2 = pl.pallas_call(
        _add_pe_kernel,
        out_shape=jax.ShapeDtypeStruct((B, C), x.dtype),
        grid_spec=pltpu.PrefetchScalarGridSpec(
            num_scalar_prefetch=0,
            grid=(n_c, n_b),  # batch innermost -> pe tile stays VMEM-resident
            in_specs=[
                pl.BlockSpec((TB, TC), lambda c, b: (b, c)),   # x rows
                pl.BlockSpec((1, TC), lambda c, b: (0, c)),    # pe (reused over b)
            ],
            out_specs=pl.BlockSpec((TB, TC), lambda c, b: (b, c)),
        ),
        compiler_params=pltpu.CompilerParams(
            # No carried state on either axis; marking both "parallel" lets
            # v7x's second TensorCore help even when one axis has 1 tile.
            dimension_semantics=("parallel", "parallel"),
            vmem_limit_bytes=vmem_limit,
        ),
        cost_estimate=pl.CostEstimate(
            flops=B * C,
            transcendentals=0,
            bytes_accessed=(2 * B * C + C) * itemsize),
    )(x2, pe2)

    return out2.reshape(B, S, E)


if __name__ == "__main__":
    batch, seq_len, embed_dim = 2, 8, 32
    max_len = 100

    key = jax.random.PRNGKey(0)
    x = jax.random.normal(key, (batch, seq_len, embed_dim), dtype=jnp.float32)

    pe = make_positional_encoding(embed_dim, max_len=max_len, dtype=jnp.float32)

    # Force the Pallas path so the kernel itself is exercised at demo size.
    out = positional_encoding_forward(x, pe, force_pallas=True)
    out = jax.block_until_ready(out)

    # Reference check in plain JAX (same semantics as the PyTorch forward).
    ref = x + pe[None, :seq_len, :]
    assert out.shape == (batch, seq_len, embed_dim)
    assert jnp.allclose(out, ref, atol=1e-6), "mismatch vs reference"

    print("KERNEL_OK")
</pallas_src>

<mosaic_0001>
module attributes {stable_mosaic.version = 11 : i64} {
  func.func @_add_pe_kernel(%arg0: i32, %arg1: i32, %arg2: memref<2x256xf32, #tpu.memory_space<vmem>>, %arg3: memref<1x256xf32, #tpu.memory_space<vmem>>, %arg4: memref<2x256xf32, #tpu.memory_space<vmem>>) attributes {dimension_semantics = [#tpu.dimension_semantics<parallel>, #tpu.dimension_semantics<parallel>], iteration_bounds = array<i64: 1, 1>, scalar_prefetch = 0 : i64, scratch_operands = 0 : i64, tpu.core_type = #tpu.core_type<tc>, window_params = [{transform_indices = @transform_0, window_bounds = array<i64: 2, 256>}, {transform_indices = @transform_1, window_bounds = array<i64: 1, 256>}, {transform_indices = @transform_2, window_bounds = array<i64: 2, 256>}]} {
    %c0 = arith.constant 0 : index
    %c0_0 = arith.constant 0 : index
    %0 = vector.load %arg2[%c0, %c0_0] : memref<2x256xf32, #tpu.memory_space<vmem>>, vector<2x256xf32>
    %c0_1 = arith.constant 0 : index
    %c0_2 = arith.constant 0 : index
    %1 = vector.load %arg3[%c0_1, %c0_2] : memref<1x256xf32, #tpu.memory_space<vmem>>, vector<1x256xf32>
    %2 = vector.broadcast %1 : vector<1x256xf32> to vector<2x256xf32>
    %3 = arith.addf %0, %2 : vector<2x256xf32>
    %c0_3 = arith.constant 0 : index
    %c0_4 = arith.constant 0 : index
    %4 = vector.load %arg4[%c0_3, %c0_4] : memref<2x256xf32, #tpu.memory_space<vmem>>, vector<2x256xf32>
    tpu.vector_store %arg4[%c0_3, %c0_4], %3 {strides = array<i32>} : memref<2x256xf32, #tpu.memory_space<vmem>>, vector<2x256xf32>,
    return
  }
  func.func @transform_0(%arg0: i32, %arg1: i32) -> (i32, i32) {
    %c0_i32 = arith.constant 0 : i32
    return %arg1, %arg0 : i32, i32
  }
  func.func @transform_1(%arg0: i32, %arg1: i32) -> (i32, i32) {
    %c0_i32 = arith.constant 0 : i32
    %c0_i32_0 = arith.constant 0 : i32
    return %c0_i32, %arg0 : i32, i32
  }
  func.func @transform_2(%arg0: i32, %arg1: i32) -> (i32, i32) {
    %c0_i32 = arith.constant 0 : i32
    return %arg1, %arg0 : i32, i32
  }
}

</mosaic_0001>

<llo_original>
// kernel: tpu_custom_call.1
$region0: #{tpu_custom_call.1}
  #allocation0 [shape = 'u32[]', space=smem, size = 0x4, offset = 0x4, fixed_abs, tag = 'smem constant byte address 0x4 - core index']
  #allocation1 [shape = 'u32[72,128]{1,0:T(1,128)}', space=vmem, size = 0x9000, scoped, tag = 'internal scratch']
  %s0 = inlined_call_operand.hbm [shape: f32[2,256], index: 0, kind: input, shape index: {}]
  %s1 = inlined_call_operand.hbm [shape: f32[1,256], index: 1, kind: input, shape index: {}]
  %s2 = inlined_call_operand.hbm [shape: f32[2,256], index: 2, kind: output, shape index: {}]
  %s3 = sld [smem:[#allocation0]]
  $region26: #{tpu_custom_call.1} parent=0
    _
  %s5 = ssub.s32 1, %s3
  %s6 = scalar_select 0, %s5, %s3
  $region1: #{tpu_custom_call.1} parent=0
    #allocation2 [shape = 'u8[2048]{0}', space=vmem, size = 0x800, scoped, tag = 'input window, operand 0, single buffered']
    #allocation3 [shape = 's32[1]{0}', space=sflag, size = 0x4, scoped, tag = 'scoped memory for tpu_custom_call.1']
    #allocation4 [shape = 's32[1]{0}', space=sflag, size = 0x4, scoped, tag = 'scoped memory for tpu_custom_call.1']
    #allocation5 [shape = 'u8[1024]{0}', space=vmem, size = 0x400, scoped, tag = 'input window, operand 1, single buffered']
    #allocation6 [shape = 's32[1]{0}', space=sflag, size = 0x4, scoped, tag = 'scoped memory for tpu_custom_call.1']
    #allocation7 [shape = 'u8[2048]{0}', space=vmem, size = 0x800, scoped, tag = 'output window, operand 0, single buffered']
    %7 = vsyncpa [#allocation3], 0
    %8 = vsyncpa [#allocation6], 0
    %9 = vsyncpa [#allocation4], 0
    // Predicated region
    $region2: #{tpu_custom_call.1} parent=1 // pred_check
      _
    $region3: #{tpu_custom_call.1} parent=1 // pred_check_branch
      %11 = sbr.rel (0) target = $region5
    $region4: #{tpu_custom_call.1} parent=1 // pred_region
      %13 = vsyncadd [#allocation3], 0
      %s15 = sshll.u32 %s0, 4
      %s16 = int_to_ptr.hbm [resolvable:$true] %s15
      %s17 = sshll.u32 [#allocation2], 4
      %s18 = int_to_ptr.vmem [resolvable:$true] %s17
      %20 = dma.hbm_to_vmem [thread:$0]  %s16, 64, %s18, [#allocation3]
    $region5: #{tpu_custom_call.1} parent=1 // pred_fallthru
      _
    // Predicated region
    $region6: #{tpu_custom_call.1} parent=1 // pred_check
      _
    $region7: #{tpu_custom_call.1} parent=1 // pred_check_branch
      %22 = sbr.rel (0) target = $region9
    $region8: #{tpu_custom_call.1} parent=1 // pred_region
      %24 = vsyncadd [#allocation6], 0
      %s26 = sshll.u32 %s1, 4
      %s27 = int_to_ptr.hbm [resolvable:$true] %s26
      %s28 = sshll.u32 [#allocation5], 4
      %s29 = int_to_ptr.vmem [resolvable:$true] %s28
      %31 = dma.hbm_to_vmem [thread:$0]  %s27, 32, %s29, [#allocation6]
    $region9: #{tpu_custom_call.1} parent=1 // pred_fallthru
      _
    // Predicated region
    $region10: #{tpu_custom_call.1} parent=1 // pred_check
      _
    $region11: #{tpu_custom_call.1} parent=1 // pred_check_branch
      %33 = sbr.rel (0) target = $region13
    $region12: #{tpu_custom_call.1} parent=1 // pred_region
      %35 = dma.done [#allocation3], 64
    $region13: #{tpu_custom_call.1} parent=1 // pred_fallthru
      _
    // Predicated region
    $region14: #{tpu_custom_call.1} parent=1 // pred_check
      _
    $region15: #{tpu_custom_call.1} parent=1 // pred_check_branch
      %37 = sbr.rel (0) target = $region17
    $region16: #{tpu_custom_call.1} parent=1 // pred_region
      %39 = dma.done [#allocation6], 32
    $region17: #{tpu_custom_call.1} parent=1 // pred_fallthru
      _
    %v40 = vld [vmem:[#allocation2] sm:$0xf]
    %v41 = vld [vmem:[#allocation5] sm:$0x3]
    %v43 = vperm.slane %v41, 0
    %v44 = vperm.slane %v41, 1
    %v45 = vrot.slane %v44, 6
    %vm46 = vcmask 1041408
    %v47 = vsel %vm46, %v43, %v45
    %v49 = vadd.f32 %v40, %v47
    %50 = vst [vmem:[#allocation7] sm:$0xf] %v49
    // Predicated region
    $region18: #{tpu_custom_call.1} parent=1 // pred_check
      _
    $region19: #{tpu_custom_call.1} parent=1 // pred_check_branch
      %52 = sbr.rel (0) target = $region21
    $region20: #{tpu_custom_call.1} parent=1 // pred_region
      %54 = vsyncadd [#allocation4], 0
      %s56 = sshll.u32 [#allocation7], 4
      %s57 = int_to_ptr.vmem [resolvable:$true] %s56
      %s58 = sshll.u32 %s2, 4
      %s59 = int_to_ptr.hbm [resolvable:$true] %s58
      %61 = dma.vmem_to_hbm [thread:$0]  %s57, 64, %s59, [#allocation4]
    $region21: #{tpu_custom_call.1} parent=1 // pred_fallthru
      _
    // Predicated region
    $region22: #{tpu_custom_call.1} parent=1 // pred_check
      _
    $region23: #{tpu_custom_call.1} parent=1 // pred_check_branch
      %63 = sbr.rel (0) target = $region25
    $region24: #{tpu_custom_call.1} parent=1 // pred_region
      %65 = dma.done [#allocation4], 64
    $region25: #{tpu_custom_call.1} parent=1 // pred_fallthru
      _
    %66 = vsyncpa [#allocation3], 1
    %67 = vsyncpa [#allocation6], 1
    %68 = vsyncpa [#allocation4], 1

</llo_original>
